<compile_context>
chip_gen: v7x
topology: tpu7x:2x2x1
jax: 0.10.0
libtpu: 0.0.40
codegen_flags: <defaults>
</compile_context>

<pallas_src>
import math
import functools

import jax
import jax.numpy as jnp
from jax.experimental import pallas as pl
from jax.experimental.pallas import tpu as pltpu


def _mdwconv_kernel(x_ref, wdw_ref, mask_ref, wpc_ref, o_ref, *, k, W, HW):
    """One batch element per grid step, flattened-spatial (lane-dense) layout.

    x_ref:    (1, Cin, L)    row-padded + flat-halo input, L = (H+2p)*W + 2p
    wdw_ref:  (k*k, Cin, 1)  depthwise tap weights (per-channel columns)
    mask_ref: (k, 1, HW)     column-validity masks (one per horizontal offset)
    wpc_ref:  (1, Cout, Cin) per-batch pointwise weights (mod & demod folded)
    o_ref:    (1, Cout, HW)
    """
    p = k // 2
    acc = None
    # Unrolled k*k taps: each tap is a static lane-offset slice of the flat
    # input; the lane shift runs on the XLU, the FMA on the VPU.
    for t in range(k * k):
        dh, dw = divmod(t, k)
        s = dh * W + dw
        term = x_ref[0, :, s:s + HW] * wdw_ref[t]          # (Cin,HW)*(Cin,1)
        if dw != p:                                        # center column: mask==1
            term = term * mask_ref[dw]                     # (Cin,HW)*(1,HW)
        acc = term if acc is None else acc + term

    # 1x1 conv: (Cout,Cin) @ (Cin,H*W) -> lane-dense (Cout, H*W)
    out = jnp.dot(wpc_ref[0], acc, preferred_element_type=jnp.float32)
    o_ref[0] = out.astype(o_ref.dtype)


def modulated_dwconv2d(x, style, weight_dw, weight_permute, wmod, bmod,
                       style_inv, demodulate=True):
    """x: (B, Cin, H, W) NCHW, style: (B, style_dim). Returns (B, Cout, H, W)."""
    B, C_in, H, W = x.shape
    C_out = weight_permute.shape[0]
    k = weight_dw.shape[-1]
    p = k // 2
    HW = H * W
    L = (H + 2 * p) * W + 2 * p
    scale = 1.0 / math.sqrt(C_in * k * k)
    f32 = jnp.float32

    # ---- hoisted constant / per-batch prep (tiny XLA ops) -------------------
    wdw_flat = weight_dw.reshape(C_in, k * k).astype(f32)            # (Cin, kk)
    wp = weight_permute[:, :, 0, 0].astype(f32)                      # (Cout, Cin)

    # modulation for the whole batch in one matmul (hoisted out of the kernel)
    mod = scale * (style.astype(f32) @ wmod.astype(f32).T
                   + bmod.astype(f32))                               # (B, Cin)

    if demodulate:
        sinv = style_inv.reshape(C_in).astype(f32)
        ssum = jnp.sum((scale * sinv[:, None] * wdw_flat) ** 2, axis=1)   # (Cin,)
        demod = jax.lax.rsqrt((wp * wp) @ ssum + 1e-8)                    # (Cout,)
        wp_eff = wp * demod[:, None]
    else:
        wp_eff = wp
    # fold per-batch channel modulation into the pointwise weights
    wpc = wp_eff[None, :, :] * mod[:, None, :]                       # (B, Cout, Cin)

    wdw_col = jnp.transpose(wdw_flat)[:, :, None]                    # (kk, Cin, 1)

    # column-validity masks for the flattened taps (depend only on dw)
    col = ((jnp.arange(HW, dtype=jnp.int32) % W)[None, :]
           + jnp.arange(k, dtype=jnp.int32)[:, None] - p)
    mask = ((col >= 0) & (col < W)).astype(f32)[:, None, :]          # (k, 1, HW)

    # ---- input prep: pad rows + small flat halo, channels stay leading ------
    # (single fused pad pass; no NCHW<->NHWC transposes anywhere)
    x_f = x.astype(f32)
    x_rp = jnp.pad(x_f, ((0, 0), (0, 0), (p, p), (0, 0)))
    x_flat = jnp.pad(x_rp.reshape(B, C_in, (H + 2 * p) * W),
                     ((0, 0), (0, 0), (p, p)))                       # (B, Cin, L)

    kernel = functools.partial(_mdwconv_kernel, k=k, W=W, HW=HW)

    flops = B * HW * C_in * (2 * k * k + 2 * C_out)
    bytes_accessed = 4 * (B * C_in * L + B * C_out * HW + B * C_out * C_in
                          + k * k * C_in + k * HW)

    out_flat = pl.pallas_call(
        kernel,
        out_shape=jax.ShapeDtypeStruct((B, C_out, HW), f32),
        grid=(B,),
        in_specs=[
            pl.BlockSpec((1, C_in, L), lambda b: (b, 0, 0)),
            pl.BlockSpec((k * k, C_in, 1), lambda b: (0, 0, 0)),
            pl.BlockSpec((k, 1, HW), lambda b: (0, 0, 0)),
            pl.BlockSpec((1, C_out, C_in), lambda b: (b, 0, 0)),
        ],
        out_specs=pl.BlockSpec((1, C_out, HW), lambda b: (b, 0, 0)),
        compiler_params=pltpu.CompilerParams(
            dimension_semantics=("parallel",)),
        cost_estimate=pl.CostEstimate(flops=flops, transcendentals=0,
                                      bytes_accessed=bytes_accessed),
    )(x_flat, wdw_col, mask, wpc)

    # trailing reshape only (free, no transpose): (B, Cout, H*W) -> NCHW
    return out_flat.reshape(B, C_out, H, W)


def reference_forward(x, style, weight_dw, weight_permute, wmod, bmod,
                      style_inv, demodulate=True):
    """Pure-JAX NCHW reference matching the PyTorch module."""
    B, C_in, H, W = x.shape
    k = weight_dw.shape[-1]
    p = k // 2
    scale = 1.0 / math.sqrt(C_in * k * k)

    mod = scale * (style @ wmod.T + bmod)                     # (B, Cin)
    xm = x * mod[:, :, None, None]
    y = jax.lax.conv_general_dilated(
        xm, weight_dw, (1, 1), [(p, p), (p, p)],
        feature_group_count=C_in,
        dimension_numbers=('NCHW', 'OIHW', 'NCHW'))
    out = jax.lax.conv_general_dilated(
        y, weight_permute, (1, 1), 'VALID',
        dimension_numbers=('NCHW', 'OIHW', 'NCHW'))
    if demodulate:
        w = jnp.transpose(weight_dw, (1, 0, 2, 3))[None] * weight_permute[None]
        sinv = style_inv.reshape(1, 1, C_in, 1, 1)
        norm = jax.lax.rsqrt(
            jnp.sum((scale * sinv * w) ** 2, axis=(2, 3, 4)) + 1e-8)  # (1, Cout)
        out = out * norm[:, :, None, None]
    return out


if __name__ == "__main__":
    # Small deterministic config consistent with the module.
    B, C_in, C_out, H, W = 2, 4, 8, 16, 16
    style_dim, kernel_size = 8, 3

    key = jax.random.PRNGKey(0)
    k0, k1, k2, k3, k4, k5 = jax.random.split(key, 6)

    # Parameters (shapes per the module's __init__).
    weight_dw = jax.random.normal(k0, (C_in, 1, kernel_size, kernel_size), jnp.float32)
    weight_permute = jax.random.normal(k1, (C_out, C_in, 1, 1), jnp.float32)
    wmod = jax.random.normal(k2, (C_in, style_dim), jnp.float32)   # Linear.weight
    bmod = jnp.ones((C_in,), jnp.float32)                          # Linear.bias = 1.0
    style_inv = jax.random.normal(k3, (1, 1, C_in, 1, 1), jnp.float32)

    # Inputs.
    x = jax.random.normal(k4, (B, C_in, H, W), jnp.float32)
    style = jax.random.normal(k5, (B, style_dim), jnp.float32)

    out = modulated_dwconv2d(x, style, weight_dw, weight_permute, wmod, bmod,
                             style_inv, demodulate=True)
    out = jax.block_until_ready(out)

    ref = reference_forward(x, style, weight_dw, weight_permute, wmod, bmod,
                            style_inv, demodulate=True)
    ref = jax.block_until_ready(ref)

    assert out.shape == (B, C_out, H, W), out.shape
    assert jnp.allclose(out, ref, rtol=2e-4, atol=2e-4), float(
        jnp.max(jnp.abs(out - ref)))

    print("KERNEL_OK")
</pallas_src>

<mosaic_0001>
module attributes {stable_mosaic.version = 11 : i64} {
  func.func @_mdwconv_kernel(%arg0: i32, %arg1: memref<1x4x290xf32, #tpu.memory_space<vmem>>, %arg2: memref<9x4x1xf32, #tpu.memory_space<vmem>>, %arg3: memref<3x1x256xf32, #tpu.memory_space<vmem>>, %arg4: memref<1x8x4xf32, #tpu.memory_space<vmem>>, %arg5: memref<1x8x256xf32, #tpu.memory_space<vmem>>) attributes {dimension_semantics = [#tpu.dimension_semantics<parallel>], iteration_bounds = array<i64: 2>, scalar_prefetch = 0 : i64, scratch_operands = 0 : i64, tpu.core_type = #tpu.core_type<tc>, window_params = [{transform_indices = @transform_0, window_bounds = array<i64: 1, 4, 290>}, {pipeline_mode = #tpu.pipeline_mode<synchronous>, transform_indices = @transform_1, window_bounds = array<i64: 9, 4, 1>}, {pipeline_mode = #tpu.pipeline_mode<synchronous>, transform_indices = @transform_2, window_bounds = array<i64: 3, 1, 256>}, {transform_indices = @transform_3, window_bounds = array<i64: 1, 8, 4>}, {transform_indices = @transform_4, window_bounds = array<i64: 1, 8, 256>}]} {
    %c0 = arith.constant 0 : index
    %c0_0 = arith.constant 0 : index
    %c0_1 = arith.constant 0 : index
    %0 = vector.load %arg1[%c0, %c0_0, %c0_1] : memref<1x4x290xf32, #tpu.memory_space<vmem>>, vector<1x4x256xf32>
    %1 = vector.shape_cast %0 : vector<1x4x256xf32> to vector<4x256xf32>
    %c0_2 = arith.constant 0 : index
    %c0_3 = arith.constant 0 : index
    %c0_4 = arith.constant 0 : index
    %2 = vector.load %arg2[%c0_2, %c0_3, %c0_4] : memref<9x4x1xf32, #tpu.memory_space<vmem>>, vector<1x4x1xf32>
    %3 = vector.shape_cast %2 : vector<1x4x1xf32> to vector<4x1xf32>
    %4 = vector.broadcast %3 : vector<4x1xf32> to vector<4x256xf32>
    %5 = arith.mulf %1, %4 : vector<4x256xf32>
    %c0_5 = arith.constant 0 : index
    %c0_6 = arith.constant 0 : index
    %c0_7 = arith.constant 0 : index
    %6 = vector.load %arg3[%c0_5, %c0_6, %c0_7] : memref<3x1x256xf32, #tpu.memory_space<vmem>>, vector<1x1x256xf32>
    %7 = vector.shape_cast %6 : vector<1x1x256xf32> to vector<1x256xf32>
    %8 = vector.broadcast %7 : vector<1x256xf32> to vector<4x256xf32>
    %9 = arith.mulf %5, %8 : vector<4x256xf32>
    %c0_8 = arith.constant 0 : index
    %c0_9 = arith.constant 0 : index
    %c1 = arith.constant 1 : index
    %10 = vector.load %arg1[%c0_8, %c0_9, %c1] : memref<1x4x290xf32, #tpu.memory_space<vmem>>, vector<1x4x256xf32>
    %11 = vector.shape_cast %10 : vector<1x4x256xf32> to vector<4x256xf32>
    %c1_10 = arith.constant 1 : index
    %c0_11 = arith.constant 0 : index
    %c0_12 = arith.constant 0 : index
    %12 = vector.load %arg2[%c1_10, %c0_11, %c0_12] : memref<9x4x1xf32, #tpu.memory_space<vmem>>, vector<1x4x1xf32>
    %13 = vector.shape_cast %12 : vector<1x4x1xf32> to vector<4x1xf32>
    %14 = vector.broadcast %13 : vector<4x1xf32> to vector<4x256xf32>
    %15 = arith.mulf %11, %14 : vector<4x256xf32>
    %16 = arith.addf %9, %15 : vector<4x256xf32>
    %c0_13 = arith.constant 0 : index
    %c0_14 = arith.constant 0 : index
    %c2 = arith.constant 2 : index
    %17 = vector.load %arg1[%c0_13, %c0_14, %c2] : memref<1x4x290xf32, #tpu.memory_space<vmem>>, vector<1x4x256xf32>
    %18 = vector.shape_cast %17 : vector<1x4x256xf32> to vector<4x256xf32>
    %c2_15 = arith.constant 2 : index
    %c0_16 = arith.constant 0 : index
    %c0_17 = arith.constant 0 : index
    %19 = vector.load %arg2[%c2_15, %c0_16, %c0_17] : memref<9x4x1xf32, #tpu.memory_space<vmem>>, vector<1x4x1xf32>
    %20 = vector.shape_cast %19 : vector<1x4x1xf32> to vector<4x1xf32>
    %21 = vector.broadcast %20 : vector<4x1xf32> to vector<4x256xf32>
    %22 = arith.mulf %18, %21 : vector<4x256xf32>
    %c2_18 = arith.constant 2 : index
    %c0_19 = arith.constant 0 : index
    %c0_20 = arith.constant 0 : index
    %23 = vector.load %arg3[%c2_18, %c0_19, %c0_20] : memref<3x1x256xf32, #tpu.memory_space<vmem>>, vector<1x1x256xf32>
    %24 = vector.shape_cast %23 : vector<1x1x256xf32> to vector<1x256xf32>
    %25 = vector.broadcast %24 : vector<1x256xf32> to vector<4x256xf32>
    %26 = arith.mulf %22, %25 : vector<4x256xf32>
    %27 = arith.addf %16, %26 : vector<4x256xf32>
    %c0_21 = arith.constant 0 : index
    %c0_22 = arith.constant 0 : index
    %c16 = arith.constant 16 : index
    %28 = vector.load %arg1[%c0_21, %c0_22, %c16] : memref<1x4x290xf32, #tpu.memory_space<vmem>>, vector<1x4x256xf32>
    %29 = vector.shape_cast %28 : vector<1x4x256xf32> to vector<4x256xf32>
    %c3 = arith.constant 3 : index
    %c0_23 = arith.constant 0 : index
    %c0_24 = arith.constant 0 : index
    %30 = vector.load %arg2[%c3, %c0_23, %c0_24] : memref<9x4x1xf32, #tpu.memory_space<vmem>>, vector<1x4x1xf32>
    %31 = vector.shape_cast %30 : vector<1x4x1xf32> to vector<4x1xf32>
    %32 = vector.broadcast %31 : vector<4x1xf32> to vector<4x256xf32>
    %33 = arith.mulf %29, %32 : vector<4x256xf32>
    %c0_25 = arith.constant 0 : index
    %c0_26 = arith.constant 0 : index
    %c0_27 = arith.constant 0 : index
    %34 = vector.load %arg3[%c0_25, %c0_26, %c0_27] : memref<3x1x256xf32, #tpu.memory_space<vmem>>, vector<1x1x256xf32>
    %35 = vector.shape_cast %34 : vector<1x1x256xf32> to vector<1x256xf32>
    %36 = vector.broadcast %35 : vector<1x256xf32> to vector<4x256xf32>
    %37 = arith.mulf %33, %36 : vector<4x256xf32>
    %38 = arith.addf %27, %37 : vector<4x256xf32>
    %c0_28 = arith.constant 0 : index
    %c0_29 = arith.constant 0 : index
    %c17 = arith.constant 17 : index
    %39 = vector.load %arg1[%c0_28, %c0_29, %c17] : memref<1x4x290xf32, #tpu.memory_space<vmem>>, vector<1x4x256xf32>
    %40 = vector.shape_cast %39 : vector<1x4x256xf32> to vector<4x256xf32>
    %c4 = arith.constant 4 : index
    %c0_30 = arith.constant 0 : index
    %c0_31 = arith.constant 0 : index
    %41 = vector.load %arg2[%c4, %c0_30, %c0_31] : memref<9x4x1xf32, #tpu.memory_space<vmem>>, vector<1x4x1xf32>
    %42 = vector.shape_cast %41 : vector<1x4x1xf32> to vector<4x1xf32>
    %43 = vector.broadcast %42 : vector<4x1xf32> to vector<4x256xf32>
    %44 = arith.mulf %40, %43 : vector<4x256xf32>
    %45 = arith.addf %38, %44 : vector<4x256xf32>
    %c0_32 = arith.constant 0 : index
    %c0_33 = arith.constant 0 : index
    %c18 = arith.constant 18 : index
    %46 = vector.load %arg1[%c0_32, %c0_33, %c18] : memref<1x4x290xf32, #tpu.memory_space<vmem>>, vector<1x4x256xf32>
    %47 = vector.shape_cast %46 : vector<1x4x256xf32> to vector<4x256xf32>
    %c5 = arith.constant 5 : index
    %c0_34 = arith.constant 0 : index
    %c0_35 = arith.constant 0 : index
    %48 = vector.load %arg2[%c5, %c0_34, %c0_35] : memref<9x4x1xf32, #tpu.memory_space<vmem>>, vector<1x4x1xf32>
    %49 = vector.shape_cast %48 : vector<1x4x1xf32> to vector<4x1xf32>
    %50 = vector.broadcast %49 : vector<4x1xf32> to vector<4x256xf32>
    %51 = arith.mulf %47, %50 : vector<4x256xf32>
    %c2_36 = arith.constant 2 : index
    %c0_37 = arith.constant 0 : index
    %c0_38 = arith.constant 0 : index
    %52 = vector.load %arg3[%c2_36, %c0_37, %c0_38] : memref<3x1x256xf32, #tpu.memory_space<vmem>>, vector<1x1x256xf32>
    %53 = vector.shape_cast %52 : vector<1x1x256xf32> to vector<1x256xf32>
    %54 = vector.broadcast %53 : vector<1x256xf32> to vector<4x256xf32>
    %55 = arith.mulf %51, %54 : vector<4x256xf32>
    %56 = arith.addf %45, %55 : vector<4x256xf32>
    %c0_39 = arith.constant 0 : index
    %c0_40 = arith.constant 0 : index
    %c32 = arith.constant 32 : index
    %57 = vector.load %arg1[%c0_39, %c0_40, %c32] : memref<1x4x290xf32, #tpu.memory_space<vmem>>, vector<1x4x256xf32>
    %58 = vector.shape_cast %57 : vector<1x4x256xf32> to vector<4x256xf32>
    %c6 = arith.constant 6 : index
    %c0_41 = arith.constant 0 : index
    %c0_42 = arith.constant 0 : index
    %59 = vector.load %arg2[%c6, %c0_41, %c0_42] : memref<9x4x1xf32, #tpu.memory_space<vmem>>, vector<1x4x1xf32>
    %60 = vector.shape_cast %59 : vector<1x4x1xf32> to vector<4x1xf32>
    %61 = vector.broadcast %60 : vector<4x1xf32> to vector<4x256xf32>
    %62 = arith.mulf %58, %61 : vector<4x256xf32>
    %c0_43 = arith.constant 0 : index
    %c0_44 = arith.constant 0 : index
    %c0_45 = arith.constant 0 : index
    %63 = vector.load %arg3[%c0_43, %c0_44, %c0_45] : memref<3x1x256xf32, #tpu.memory_space<vmem>>, vector<1x1x256xf32>
    %64 = vector.shape_cast %63 : vector<1x1x256xf32> to vector<1x256xf32>
    %65 = vector.broadcast %64 : vector<1x256xf32> to vector<4x256xf32>
    %66 = arith.mulf %62, %65 : vector<4x256xf32>
    %67 = arith.addf %56, %66 : vector<4x256xf32>
    %c0_46 = arith.constant 0 : index
    %c0_47 = arith.constant 0 : index
    %c33 = arith.constant 33 : index
    %68 = vector.load %arg1[%c0_46, %c0_47, %c33] : memref<1x4x290xf32, #tpu.memory_space<vmem>>, vector<1x4x256xf32>
    %69 = vector.shape_cast %68 : vector<1x4x256xf32> to vector<4x256xf32>
    %c7 = arith.constant 7 : index
    %c0_48 = arith.constant 0 : index
    %c0_49 = arith.constant 0 : index
    %70 = vector.load %arg2[%c7, %c0_48, %c0_49] : memref<9x4x1xf32, #tpu.memory_space<vmem>>, vector<1x4x1xf32>
    %71 = vector.shape_cast %70 : vector<1x4x1xf32> to vector<4x1xf32>
    %72 = vector.broadcast %71 : vector<4x1xf32> to vector<4x256xf32>
    %73 = arith.mulf %69, %72 : vector<4x256xf32>
    %74 = arith.addf %67, %73 : vector<4x256xf32>
    %c0_50 = arith.constant 0 : index
    %c0_51 = arith.constant 0 : index
    %c34 = arith.constant 34 : index
    %75 = vector.load %arg1[%c0_50, %c0_51, %c34] : memref<1x4x290xf32, #tpu.memory_space<vmem>>, vector<1x4x256xf32>
    %76 = vector.shape_cast %75 : vector<1x4x256xf32> to vector<4x256xf32>
    %c8 = arith.constant 8 : index
    %c0_52 = arith.constant 0 : index
    %c0_53 = arith.constant 0 : index
    %77 = vector.load %arg2[%c8, %c0_52, %c0_53] : memref<9x4x1xf32, #tpu.memory_space<vmem>>, vector<1x4x1xf32>
    %78 = vector.shape_cast %77 : vector<1x4x1xf32> to vector<4x1xf32>
    %79 = vector.broadcast %78 : vector<4x1xf32> to vector<4x256xf32>
    %80 = arith.mulf %76, %79 : vector<4x256xf32>
    %c2_54 = arith.constant 2 : index
    %c0_55 = arith.constant 0 : index
    %c0_56 = arith.constant 0 : index
    %81 = vector.load %arg3[%c2_54, %c0_55, %c0_56] : memref<3x1x256xf32, #tpu.memory_space<vmem>>, vector<1x1x256xf32>
    %82 = vector.shape_cast %81 : vector<1x1x256xf32> to vector<1x256xf32>
    %83 = vector.broadcast %82 : vector<1x256xf32> to vector<4x256xf32>
    %84 = arith.mulf %80, %83 : vector<4x256xf32>
    %85 = arith.addf %74, %84 : vector<4x256xf32>
    %c0_57 = arith.constant 0 : index
    %c0_58 = arith.constant 0 : index
    %c0_59 = arith.constant 0 : index
    %86 = vector.load %arg4[%c0_57, %c0_58, %c0_59] : memref<1x8x4xf32, #tpu.memory_space<vmem>>, vector<1x8x4xf32>
    %87 = vector.shape_cast %86 : vector<1x8x4xf32> to vector<8x4xf32>
    %cst = arith.constant dense<0.000000e+00> : vector<8x256xf32>
    %88 = tpu.matmul %87, %85, %cst {dimension_numbers = #tpu.dot_dimension_numbers<[1], [0], [0], [1], [0, 0, 1, 1], [], []>} : vector<8x4xf32>, vector<4x256xf32>, vector<8x256xf32> -> vector<8x256xf32>
    %c0_60 = arith.constant 0 : index
    %c0_61 = arith.constant 0 : index
    %c0_62 = arith.constant 0 : index
    %89 = vector.load %arg5[%c0_60, %c0_61, %c0_62] : memref<1x8x256xf32, #tpu.memory_space<vmem>>, vector<1x8x256xf32>
    %90 = vector.shape_cast %89 : vector<1x8x256xf32> to vector<8x256xf32>
    %91 = vector.shape_cast %88 : vector<8x256xf32> to vector<1x8x256xf32>
    tpu.vector_store %arg5[%c0_60, %c0_61, %c0_62], %91 {strides = array<i32>} : memref<1x8x256xf32, #tpu.memory_space<vmem>>, vector<1x8x256xf32>,
    return
  }
  func.func @transform_0(%arg0: i32) -> (i32, i32, i32) {
    %c0_i32 = arith.constant 0 : i32
    %c0_i32_0 = arith.constant 0 : i32
    %c0_i32_1 = arith.constant 0 : i32
    return %arg0, %c0_i32, %c0_i32_0 : i32, i32, i32
  }
  func.func @transform_1(%arg0: i32) -> (i32, i32, i32) {
    %c0_i32 = arith.constant 0 : i32
    %c0_i32_0 = arith.constant 0 : i32
    %c0_i32_1 = arith.constant 0 : i32
    %c0_i32_2 = arith.constant 0 : i32
    return %c0_i32, %c0_i32_0, %c0_i32_1 : i32, i32, i32
  }
  func.func @transform_2(%arg0: i32) -> (i32, i32, i32) {
    %c0_i32 = arith.constant 0 : i32
    %c0_i32_0 = arith.constant 0 : i32
    %c0_i32_1 = arith.constant 0 : i32
    %c0_i32_2 = arith.constant 0 : i32
    return %c0_i32, %c0_i32_0, %c0_i32_1 : i32, i32, i32
  }
  func.func @transform_3(%arg0: i32) -> (i32, i32, i32) {
    %c0_i32 = arith.constant 0 : i32
    %c0_i32_0 = arith.constant 0 : i32
    %c0_i32_1 = arith.constant 0 : i32
    return %arg0, %c0_i32, %c0_i32_0 : i32, i32, i32
  }
  func.func @transform_4(%arg0: i32) -> (i32, i32, i32) {
    %c0_i32 = arith.constant 0 : i32
    %c0_i32_0 = arith.constant 0 : i32
    %c0_i32_1 = arith.constant 0 : i32
    return %arg0, %c0_i32, %c0_i32_0 : i32, i32, i32
  }
}

</mosaic_0001>

<llo_original>
// kernel: tpu_custom_call.1
$region0: #{tpu_custom_call.1}
  #allocation0 [shape = 'u32[]', space=smem, size = 0x4, offset = 0x4, fixed_abs, tag = 'smem constant byte address 0x4 - core index']
  #allocation1 [shape = 'u32[144,128]{1,0:T(1,128)}', space=vmem, size = 0x12000, scoped, tag = 'internal scratch']
  %s0 = inlined_call_operand.vmem [shape: f32[2,4,290], index: 0, kind: input, shape index: {}]
  %s1 = inlined_call_operand.vmem [shape: f32[9,4,1], index: 1, kind: input, shape index: {}]
  %s2 = inlined_call_operand.vmem [shape: f32[3,1,256], index: 2, kind: input, shape index: {}]
  %s3 = inlined_call_operand.vmem [shape: f32[2,8,4], index: 3, kind: input, shape index: {}]
  %s4 = inlined_call_operand.hbm [shape: f32[2,8,256], index: 4, kind: output, shape index: {}]
  %s5 = sld [smem:[#allocation0]]
  $region49: #{tpu_custom_call.1} parent=0
    _
  %s7 = ssub.s32 1, %s5
  %s8 = scalar_select 0, %s7, %s5
  $region1: #{tpu_custom_call.1} parent=0
    #allocation2 [shape = 'u8[16384]{0}', space=vmem, size = 0x4000, scoped, tag = 'output window, operand 0']
    #allocation3 [shape = 's32[2]{0}', space=sflag, size = 0x8, scoped, tag = 'scoped memory for tpu_custom_call.1']
    %9 = vsyncpa [#allocation3], 0
    %s10 = scalar_lea.sflag [#allocation3], 1
    %11 = vsyncpa %s10, 0
    loop: start=0, step=1, limit=4
    $region2: #{tpu_custom_call.1} parent=1 // loop_pre_header
      _
    $region3: #{tpu_custom_call.1} parent=1 // loop_header
      %s13 = sphi 0, %s17
      %p14 = scmp.ge.s32.totalorder %s13, 4
      %s23 = sphi 0, %s25
      %s26 = sphi 0, %s23
      %s27 = sphi 0, %s26
      %s43 = sphi 0, %s27
      %s47 = sphi 0, %s47
      %s49 = sphi 0, %s47
      %s50 = sphi 0, %s49
      %s64 = sphi 0, %s50
      %s68 = sphi 0, %s68
      %s70 = sphi 0, %s68
      %s71 = sphi 0, %s70
      %s85 = sphi 0, %s71
      %s91 = sphi 0, %s93
      %s94 = sphi 0, %s91
      %s95 = sphi 0, %s94
      %s111 = sphi 0, %s95
      %s117 = sphi 0, %s119
      %s120 = sphi 0, %s117
      %s121 = sphi 0, %s120
      %s137 = sphi 0, %s121
    $region4: #{tpu_custom_call.1} parent=1 // loop_header_branch
      %16 = sbr.rel (%p14) target = $region8
    $region5: #{tpu_custom_call.1} parent=1 // loop_body
      %s18 = ssub.s32 %s13, 1
      %s19 = ssub.s32 %s13, 2
      %s20 = sadd.s32 %s13, 1
      %s21 = ssub.s32 %s13, %s20
      %p22 = scmp.eq.s32.totalorder %s21, 0
      %s24 = sadd.s32 %s23, 1
      %s25 = scalar_select %p22, %s23, %s24
      %p28 = pneg %p22
      %p29 = scmp.eq.s32.totalorder %s13, 1
      %p30 = por %p28, %p29
      %p31 = scmp.ne.s32.totalorder %s23, %s26
      %p32 = scmp.eq.s32.totalorder %s13, 0
      %p33 = por %p31, %p32
      %p34 = scmp.ne.s32.totalorder %s23, %s26
      %p35 = scmp.eq.s32.totalorder %s18, 1
      %p36 = por %p34, %p35
      %p37 = scmp.ne.s32.totalorder %s26, %s27
      %p38 = scmp.eq.s32.totalorder %s18, 0
      %p39 = por %p37, %p38
      %p40 = scmp.ne.s32.totalorder %s26, %s27
      %p41 = scmp.eq.s32.totalorder %s19, 1
      %p42 = por %p40, %p41
      %p44 = scmp.ne.s32.totalorder %s27, %s43
      %p45 = scmp.eq.s32.totalorder %s19, 0
      %p46 = por %p44, %p45
      %s48 = sadd.s32 %s47, 1
      %p51 = scmp.eq.s32.totalorder %s13, 1
      %p52 = scmp.ne.s32.totalorder %s47, %s49
      %p53 = scmp.eq.s32.totalorder %s13, 0
      %p54 = por %p52, %p53
      %p55 = scmp.ne.s32.totalorder %s47, %s49
      %p56 = scmp.eq.s32.totalorder %s18, 1
      %p57 = por %p55, %p56
      %p58 = scmp.ne.s32.totalorder %s49, %s50
      %p59 = scmp.eq.s32.totalorder %s18, 0
      %p60 = por %p58, %p59
      %p61 = scmp.ne.s32.totalorder %s49, %s50
      %p62 = scmp.eq.s32.totalorder %s19, 1
      %p63 = por %p61, %p62
      %p65 = scmp.ne.s32.totalorder %s50, %s64
      %p66 = scmp.eq.s32.totalorder %s19, 0
      %p67 = por %p65, %p66
      %s69 = sadd.s32 %s68, 1
      %p72 = scmp.eq.s32.totalorder %s13, 1
      %p73 = scmp.ne.s32.totalorder %s68, %s70
      %p74 = scmp.eq.s32.totalorder %s13, 0
      %p75 = por %p73, %p74
      %p76 = scmp.ne.s32.totalorder %s68, %s70
      %p77 = scmp.eq.s32.totalorder %s18, 1
      %p78 = por %p76, %p77
      %p79 = scmp.ne.s32.totalorder %s70, %s71
      %p80 = scmp.eq.s32.totalorder %s18, 0
      %p81 = por %p79, %p80
      %p82 = scmp.ne.s32.totalorder %s70, %s71
      %p83 = scmp.eq.s32.totalorder %s19, 1
      %p84 = por %p82, %p83
      %p86 = scmp.ne.s32.totalorder %s71, %s85
      %p87 = scmp.eq.s32.totalorder %s19, 0
      %p88 = por %p86, %p87
      %s89 = ssub.s32 %s13, %s20
      %p90 = scmp.eq.s32.totalorder %s89, 0
      %s92 = sadd.s32 %s91, 1
      %s93 = scalar_select %p90, %s91, %s92
      %p96 = pneg %p90
      %p97 = scmp.eq.s32.totalorder %s13, 1
      %p98 = por %p96, %p97
      %p99 = scmp.ne.s32.totalorder %s91, %s94
      %p100 = scmp.eq.s32.totalorder %s13, 0
      %p101 = por %p99, %p100
      %p102 = scmp.ne.s32.totalorder %s91, %s94
      %p103 = scmp.eq.s32.totalorder %s18, 1
      %p104 = por %p102, %p103
      %p105 = scmp.ne.s32.totalorder %s94, %s95
      %p106 = scmp.eq.s32.totalorder %s18, 0
      %p107 = por %p105, %p106
      %p108 = scmp.ne.s32.totalorder %s94, %s95
      %p109 = scmp.eq.s32.totalorder %s19, 1
      %p110 = por %p108, %p109
      %p112 = scmp.ne.s32.totalorder %s95, %s111
      %p113 = scmp.eq.s32.totalorder %s19, 0
      %p114 = por %p112, %p113
      %s115 = ssub.s32 %s13, %s20
      %p116 = scmp.eq.s32.totalorder %s115, 0
      %s118 = sadd.s32 %s117, 1
      %s119 = scalar_select %p116, %s117, %s118
      %p122 = pneg %p116
      %p123 = scmp.eq.s32.totalorder %s13, 1
      %p124 = por %p122, %p123
      %p125 = scmp.ne.s32.totalorder %s117, %s120
      %p126 = scmp.eq.s32.totalorder %s13, 0
      %p127 = por %p125, %p126
      %p128 = scmp.ne.s32.totalorder %s117, %s120
      %p129 = scmp.eq.s32.totalorder %s18, 1
      %p130 = por %p128, %p129
      %p131 = scmp.ne.s32.totalorder %s120, %s121
      %p132 = scmp.eq.s32.totalorder %s18, 0
      %p133 = por %p131, %p132
      %p134 = scmp.ne.s32.totalorder %s120, %s121
      %p135 = scmp.eq.s32.totalorder %s19, 1
      %p136 = por %p134, %p135
      %p138 = scmp.ne.s32.totalorder %s121, %s137
      %p139 = scmp.eq.s32.totalorder %s19, 0
      %p140 = por %p138, %p139
      %p141 = scmp.le.s32.totalorder 1, %s13
      %p142 = scmp.lt.s32.totalorder %s13, 3
      %p143 = pnand %p141, %p142
      %p144 = pneg %p143
      // Predicated region
      $region9: #{tpu_custom_call.1} parent=5 // pred_check
        _
      $region10: #{tpu_custom_call.1} parent=5 // pred_check_branch
        %146 = sbr.rel (%p143) target = $region12
      $region11: #{tpu_custom_call.1} parent=5 // pred_region
        %s147 = ssub.s32 %s13, 1
        // Predicated region
        $region13: #{tpu_custom_call.1} parent=11 // pred_check
          %p148 = pneg %p60
        $region14: #{tpu_custom_call.1} parent=11 // pred_check_branch
          %150 = sbr.rel (%p148) target = $region16
        $region15: #{tpu_custom_call.1} parent=11 // pred_region
          _
        $region16: #{tpu_custom_call.1} parent=11 // pred_fallthru
          _
        // Predicated region
        $region17: #{tpu_custom_call.1} parent=11 // pred_check
          %p151 = pneg %p81
        $region18: #{tpu_custom_call.1} parent=11 // pred_check_branch
          %153 = sbr.rel (%p151) target = $region20
        $region19: #{tpu_custom_call.1} parent=11 // pred_region
          _
        $region20: #{tpu_custom_call.1} parent=11 // pred_fallthru
          _
      $region12: #{tpu_custom_call.1} parent=5 // pred_fallthru
        _
      %p154 = scmp.lt.s32.totalorder %s13, 2
      // Predicated region
      $region21: #{tpu_custom_call.1} parent=5 // pred_check
        %p155 = pneg %p154
      $region22: #{tpu_custom_call.1} parent=5 // pred_check_branch
        %157 = sbr.rel (%p155) target = $region24
      $region23: #{tpu_custom_call.1} parent=5 // pred_region
        // Predicated region
        $region25: #{tpu_custom_call.1} parent=23 // pred_check
          %p158 = pneg %p33
        $region26: #{tpu_custom_call.1} parent=23 // pred_check_branch
          %160 = sbr.rel (%p158) target = $region28
        $region27: #{tpu_custom_call.1} parent=23 // pred_region
          %p161 = scmp.lt.s32.totalorder %s13, 1
          %s162 = scalar_select %p161, %s13, 1
          %s163 = smul.addr %s162, 3
          %s164 = smul.addr %s163, 4
          %s165 = scalar_lea.vmem %s0, %s164
        $region28: #{tpu_custom_call.1} parent=23 // pred_fallthru
          _
        // Predicated region
        $region29: #{tpu_custom_call.1} parent=23 // pred_check
          %p166 = pneg %p101
        $region30: #{tpu_custom_call.1} parent=23 // pred_check_branch
          %168 = sbr.rel (%p166) target = $region32
        $region31: #{tpu_custom_call.1} parent=23 // pred_region
          %p169 = scmp.lt.s32.totalorder %s13, 1
          %s170 = scalar_select %p169, %s13, 1
          %s171 = smul.addr %s170, 8
          %s172 = scalar_lea.vmem %s3, %s171
        $region32: #{tpu_custom_call.1} parent=23 // pred_fallthru
          _
      $region24: #{tpu_custom_call.1} parent=5 // pred_fallthru
        _
      %p173 = scmp.le.s32.totalorder 1, %s13
      %p174 = scmp.lt.s32.totalorder %s13, 3
      %p175 = pnand %p173, %p174
      %p176 = pneg %p175
      // Predicated region
      $region33: #{tpu_custom_call.1} parent=5 // pred_check
        _
      $region34: #{tpu_custom_call.1} parent=5 // pred_check_branch
        %178 = sbr.rel (%p175) target = $region36
      $region35: #{tpu_custom_call.1} parent=5 // pred_region
        %s179 = ssub.s32 %s13, 1
        %p180 = scmp.lt.s32.totalorder %s18, 1
        %s181 = scalar_select %p180, %s18, 1
        %s182 = smul.addr %s181, 3
        %s183 = smul.addr %s182, 4
        %s184 = scalar_lea.vmem %s0, %s183
        %p185 = pneg %p39
        %p186 = pneg %p36
        %p187 = pneg %p60
        %p188 = pneg %p57
        %p189 = pneg %p81
        %p190 = pneg %p78
        %p191 = scmp.lt.s32.totalorder %s18, 1
        %s192 = scalar_select %p191, %s18, 1
        %s193 = smul.addr %s192, 8
        %s194 = scalar_lea.vmem %s3, %s193
        %p195 = pneg %p107
        %p196 = pneg %p104
        %p197 = pneg %p133
        %p198 = pneg %p130
        %s199 = sand.u32 %s120, 1
        %s200 = scalar_lea.sflag [#allocation3], %s199
        %s201 = sand.u32 %s120, 1
        %s202 = smul.addr %s201, 16
        %s203 = scalar_lea.vmem [#allocation2], %s202
        %p204 = scmp.lt.s32.totalorder %s18, 1
        %s205 = scalar_select %p204, %s18, 1
        %s206 = smul.addr %s205, 3
        %s207 = smul.addr %s206, 4
        %s208 = scalar_lea.vmem %s0, %s207
        %p209 = scmp.lt.s32.totalorder %s18, 1
        %s210 = scalar_select %p209, %s18, 1
        %s211 = smul.addr %s210, 8
        %s212 = scalar_lea.vmem %s3, %s211
        %v213 = vld [vmem:[%s208] sm:$0xff]
        %v214 = vld [vmem:[%s1] sm:$0xf]
        %216 = vset.pattern.permute.xlu0 0
        %217 = vperm.xlu0 %216, %v214
        %v218 = vpop.permute.xlu0 %217
        %v220 = vunpack.c.l.s4 839922192
        %v221 = vunpack.c.0.s8 %v220
        %v222 = vlaneseq
        %v223 = vshrl.u32 %v222, 7
        %v224 = vsub.s32 %v221, %v223
        %v225 = vrot.slane %v218, %v224
        %v227 = vmul.f32 %v213, %v225
        %v228 = vld [vmem:[%s2] sm:$0x3]
        %v230 = vlaneseq
        %v231 = vshrl.u32 %v230, 7
        %v232 = vsub.s32 0, %v231
        %v233 = vrot.slane %v228, %v232
        %v234 = vlaneseq
        %v235 = vshrl.u32 %v234, 7
        %v236 = vsub.s32 1, %v235
        %v237 = vrot.slane %v228, %v236
        %v238 = vcombine.low %v233, %v237
        %v240 = vmul.f32 %v227, %v238
        %v241 = vld [vmem:[%s208] sm:$0xff]
        %v242 = vld [vmem:[%s208 + $0x8] sm:$0xf]
        %s243 = scalar_lea.vmem %s1, 4
        %v244 = vld [vmem:[%s243] sm:$0xf]
        %246 = vset.pattern.permute.xlu0 0
        %247 = vperm.xlu0 %246, %v244
        %v248 = vpop.permute.xlu0 %247
        %v250 = vunpack.c.l.s4 839922192
        %v251 = vunpack.c.0.s8 %v250
        %v252 = vlaneseq
        %v253 = vshrl.u32 %v252, 7
        %v254 = vsub.s32 %v251, %v253
        %v255 = vrot.slane %v248, %v254
        %v257 = vmul.f32 %v241, %v255
        %v258 = vmul.f32 %v242, %v255
        %261 = vrot.lane.b32.xlu0 %v257, 127
        %v262 = vpop.permute.xlu0 %261
        %263 = vrot.lane.b32.xlu0 %v258, 127
        %v264 = vpop.permute.xlu0 %263
        %v265 = vrot.slane %v262, 4
        %v266 = vrot.slane %v264, 4
        %vm267 = vcmask 1043456
        %v268 = vsel %vm267, %v265, %v266
        %vm269 = vcmask 1039360
        %v270 = vsel %vm269, %v262, %v268
        %v272 = vadd.f32 %v240, %v270
        %s273 = scalar_lea.vmem %s1, 8
        %v274 = vld [vmem:[%s273] sm:$0xf]
        %276 = vset.pattern.permute.xlu0 0
        %277 = vperm.xlu0 %276, %v274
        %v278 = vpop.permute.xlu0 %277
        %v280 = vunpack.c.l.s4 839922192
        %v281 = vunpack.c.0.s8 %v280
        %v282 = vlaneseq
        %v283 = vshrl.u32 %v282, 7
        %v284 = vsub.s32 %v281, %v283
        %v285 = vrot.slane %v278, %v284
        %v287 = vmul.f32 %v241, %v285
        %v288 = vmul.f32 %v242, %v285
        %s289 = scalar_lea.vmem %s2, 4
        %v290 = vld [vmem:[%s289] sm:$0x3]
        %v292 = vlaneseq
        %v293 = vshrl.u32 %v292, 7
        %v294 = vsub.s32 0, %v293
        %v295 = vrot.slane %v290, %v294
        %v296 = vlaneseq
        %v297 = vshrl.u32 %v296, 7
        %v298 = vsub.s32 1, %v297
        %v299 = vrot.slane %v290, %v298
        %v300 = vcombine.low %v295, %v299
        %301 = vrot.lane.b32.xlu0 %v300, 2
        %v302 = vpop.permute.xlu0 %301
        %v303 = vrot.slane %v302, 4
        %vm304 = vcmask 15360
        %v305 = vsel %vm304, %v303, %v302
        %v308 = vmul.f32 %v287, %v305
        %v309 = vmul.f32 %v288, %v303
        %312 = vrot.lane.b32.xlu0 %v308, 126
        %v313 = vpop.permute.xlu0 %312
        %314 = vrot.lane.b32.xlu0 %v309, 126
        %v315 = vpop.permute.xlu0 %314
        %v316 = vrot.slane %v313, 4
        %v317 = vrot.slane %v315, 4
        %v318 = vsel %vm267, %v316, %v317
        %vm319 = vcmask 1031168
        %v320 = vsel %vm319, %v313, %v318
        %v322 = vadd.f32 %v272, %v320
        %v323 = vld [vmem:[%s208] sm:$0xff]
        %v324 = vld [vmem:[%s208 + $0x8] sm:$0xf]
        %s325 = scalar_lea.vmem %s1, 12
        %v326 = vld [vmem:[%s325] sm:$0xf]
        %328 = vset.pattern.permute.xlu0 0
        %329 = vperm.xlu0 %328, %v326
        %v330 = vpop.permute.xlu0 %329
        %v332 = vunpack.c.l.s4 839922192
        %v333 = vunpack.c.0.s8 %v332
        %v334 = vlaneseq
        %v335 = vshrl.u32 %v334, 7
        %v336 = vsub.s32 %v333, %v335
        %v337 = vrot.slane %v330, %v336
        %v339 = vmul.f32 %v323, %v337
        %v340 = vmul.f32 %v324, %v337
        %341 = vrot.lane.b32.xlu0 %v238, 16
        %v342 = vpop.permute.xlu0 %341
        %v343 = vrot.slane %v342, 4
        %vm344 = vcmask 130048
        %v345 = vsel %vm344, %v343, %v342
        %v348 = vmul.f32 %v339, %v345
        %v349 = vmul.f32 %v340, %v343
        %352 = vrot.lane.b32.xlu0 %v348, 112
        %v353 = vpop.permute.xlu0 %352
        %354 = vrot.lane.b32.xlu0 %v349, 112
        %v355 = vpop.permute.xlu0 %354
        %v356 = vrot.slane %v353, 4
        %v357 = vrot.slane %v355, 4
        %v358 = vsel %vm267, %v356, %v357
        %vm359 = vcmask 916480
        %v360 = vsel %vm359, %v353, %v358
        %v362 = vadd.f32 %v322, %v360
        %v363 = vld [vmem:[%s208] sm:$0xff]
        %v364 = vld [vmem:[%s208 + $0x8] sm:$0xf]
        %s365 = scalar_lea.vmem %s1, 16
        %v366 = vld [vmem:[%s365] sm:$0xf]
        %368 = vset.pattern.permute.xlu0 0
        %369 = vperm.xlu0 %368, %v366
        %v370 = vpop.permute.xlu0 %369
        %v372 = vunpack.c.l.s4 839922192
        %v373 = vunpack.c.0.s8 %v372
        %v374 = vlaneseq
        %v375 = vshrl.u32 %v374, 7
        %v376 = vsub.s32 %v373, %v375
        %v377 = vrot.slane %v370, %v376
        %v379 = vmul.f32 %v363, %v377
        %v380 = vmul.f32 %v364, %v377
        %383 = vrot.lane.b32.xlu0 %v379, 111
        %v384 = vpop.permute.xlu0 %383
        %385 = vrot.lane.b32.xlu0 %v380, 111
        %v386 = vpop.permute.xlu0 %385
        %v387 = vrot.slane %v384, 4
        %v388 = vrot.slane %v386, 4
        %v389 = vsel %vm267, %v387, %v388
        %vm390 = vcmask 908288
        %v391 = vsel %vm390, %v384, %v389
        %v393 = vadd.f32 %v362, %v391
        %s394 = scalar_lea.vmem %s1, 20
        %v395 = vld [vmem:[%s394] sm:$0xf]
        %397 = vset.pattern.permute.xlu0 0
        %398 = vperm.xlu0 %397, %v395
        %v399 = vpop.permute.xlu0 %398
        %v401 = vunpack.c.l.s4 839922192
        %v402 = vunpack.c.0.s8 %v401
        %v403 = vlaneseq
        %v404 = vshrl.u32 %v403, 7
        %v405 = vsub.s32 %v402, %v404
        %v406 = vrot.slane %v399, %v405
        %v408 = vmul.f32 %v363, %v406
        %v409 = vmul.f32 %v364, %v406
        %410 = vrot.lane.b32.xlu0 %v300, 18
        %v411 = vpop.permute.xlu0 %410
        %v412 = vrot.slane %v411, 4
        %vm413 = vcmask 146432
        %v414 = vsel %vm413, %v412, %v411
        %v417 = vmul.f32 %v408, %v414
        %v418 = vmul.f32 %v409, %v412
        %421 = vrot.lane.b32.xlu0 %v417, 110
        %v422 = vpop.permute.xlu0 %421
        %423 = vrot.lane.b32.xlu0 %v418, 110
        %v424 = vpop.permute.xlu0 %423
        %v425 = vrot.slane %v422, 4
        %v426 = vrot.slane %v424, 4
        %v427 = vsel %vm267, %v425, %v426
        %vm428 = vcmask 900096
        %v429 = vsel %vm428, %v422, %v427
        %v431 = vadd.f32 %v393, %v429
        %v432 = vld [vmem:[%s208] sm:$0xff]
        %v433 = vld [vmem:[%s208 + $0x8] sm:$0xf]
        %s434 = scalar_lea.vmem %s1, 24
        %v435 = vld [vmem:[%s434] sm:$0xf]
        %437 = vset.pattern.permute.xlu0 0
        %438 = vperm.xlu0 %437, %v435
        %v439 = vpop.permute.xlu0 %438
        %v441 = vunpack.c.l.s4 839922192
        %v442 = vunpack.c.0.s8 %v441
        %v443 = vlaneseq
        %v444 = vshrl.u32 %v443, 7
        %v445 = vsub.s32 %v442, %v444
        %v446 = vrot.slane %v439, %v445
        %v448 = vmul.f32 %v432, %v446
        %v449 = vmul.f32 %v433, %v446
        %450 = vrot.lane.b32.xlu0 %v238, 32
        %v451 = vpop.permute.xlu0 %450
        %v452 = vrot.slane %v451, 4
        %vm453 = vcmask 261120
        %v454 = vsel %vm453, %v452, %v451
        %v457 = vmul.f32 %v448, %v454
        %v458 = vmul.f32 %v449, %v452
        %461 = vrot.lane.b32.xlu0 %v457, 96
        %v462 = vpop.permute.xlu0 %461
        %463 = vrot.lane.b32.xlu0 %v458, 96
        %v464 = vpop.permute.xlu0 %463
        %v465 = vrot.slane %v462, 4
        %v466 = vrot.slane %v464, 4
        %v467 = vsel %vm267, %v465, %v466
        %vm468 = vcmask 785408
        %v469 = vsel %vm468, %v462, %v467
        %v471 = vadd.f32 %v431, %v469
        %v472 = vld [vmem:[%s208] sm:$0xff]
        %v473 = vld [vmem:[%s208 + $0x8] sm:$0xf]
        %s474 = scalar_lea.vmem %s1, 28
        %v475 = vld [vmem:[%s474] sm:$0xf]
        %477 = vset.pattern.permute.xlu0 0
        %478 = vperm.xlu0 %477, %v475
        %v479 = vpop.permute.xlu0 %478
        %v481 = vunpack.c.l.s4 839922192
        %v482 = vunpack.c.0.s8 %v481
        %v483 = vlaneseq
        %v484 = vshrl.u32 %v483, 7
        %v485 = vsub.s32 %v482, %v484
        %v486 = vrot.slane %v479, %v485
        %v488 = vmul.f32 %v472, %v486
        %v489 = vmul.f32 %v473, %v486
        %492 = vrot.lane.b32.xlu0 %v488, 95
        %v493 = vpop.permute.xlu0 %492
        %494 = vrot.lane.b32.xlu0 %v489, 95
        %v495 = vpop.permute.xlu0 %494
        %v496 = vrot.slane %v493, 4
        %v497 = vrot.slane %v495, 4
        %v498 = vsel %vm267, %v496, %v497
        %vm499 = vcmask 777216
        %v500 = vsel %vm499, %v493, %v498
        %v502 = vadd.f32 %v471, %v500
        %s503 = scalar_lea.vmem %s1, 32
        %v504 = vld [vmem:[%s503] sm:$0xf]
        %506 = vset.pattern.permute.xlu0 0
        %507 = vperm.xlu0 %506, %v504
        %v508 = vpop.permute.xlu0 %507
        %v510 = vunpack.c.l.s4 839922192
        %v511 = vunpack.c.0.s8 %v510
        %v512 = vlaneseq
        %v513 = vshrl.u32 %v512, 7
        %v514 = vsub.s32 %v511, %v513
        %v515 = vrot.slane %v508, %v514
        %v517 = vmul.f32 %v472, %v515
        %v518 = vmul.f32 %v473, %v515
        %519 = vrot.lane.b32.xlu0 %v300, 34
        %v520 = vpop.permute.xlu0 %519
        %v521 = vrot.slane %v520, 4
        %vm522 = vcmask 277504
        %v523 = vsel %vm522, %v521, %v520
        %v526 = vmul.f32 %v517, %v523
        %v527 = vmul.f32 %v518, %v521
        %530 = vrot.lane.b32.xlu0 %v526, 94
        %v531 = vpop.permute.xlu0 %530
        %532 = vrot.lane.b32.xlu0 %v527, 94
        %v533 = vpop.permute.xlu0 %532
        %v534 = vrot.slane %v531, 4
        %v535 = vrot.slane %v533, 4
        %v536 = vsel %vm267, %v534, %v535
        %vm537 = vcmask 769024
        %v538 = vsel %vm537, %v531, %v536
        %v540 = vadd.f32 %v502, %v538
        %v541 = vld [vmem:[%s212] sm:$0xff]
        %v543 = vcombine.high %v540, %v540
        %vm544 = vcmask 31744
        %v546 = vsel %vm544, %v541, 0
        %v548 = vsel %vm267, %v540, 0
        %v550 = vsel %vm267, %v543, 0
        %552 = vmatprep.subr.mxu0 %v550
        %553 = vmatpush1.msra.mxu0 %v548
        %554 = vmatprep.subr.mxu0 0.0
        %555 = vmatpush1.msra.mxu0 0.0
        %556 = vmatprep.subr.mxu0 0.0
        %557 = vmatpush1.msra.mxu0 0.0
        %558 = vmatprep.subr.mxu0 0.0
        %559 = vmatpush1.msra.mxu0 0.0
        %560 = vmatprep.subr.mxu0 0.0
        %561 = vmatpush1.msra.mxu0 0.0
        %562 = vmatprep.subr.mxu0 0.0
        %563 = vmatpush1.msra.mxu0 0.0
        %564 = vmatprep.subr.mxu0 0.0
        %565 = vmatpush1.msra.mxu0 0.0
        %566 = vmatprep.subr.mxu0 0.0
        %567 = vmatpush1.msra.mxu0 0.0
        %568 = vmatprep.subr.mxu0 0.0
        %569 = vmatpush1.msra.mxu0 0.0
        %570 = vmatprep.subr.mxu0 0.0
        %571 = vmatpush1.msra.mxu0 0.0
        %572 = vmatprep.subr.mxu0 0.0
        %573 = vmatpush1.msra.mxu0 0.0
        %574 = vmatprep.subr.mxu0 0.0
        %575 = vmatpush1.msra.mxu0 0.0
        %576 = vmatprep.subr.mxu0 0.0
        %577 = vmatpush1.msra.mxu0 0.0
        %578 = vmatprep.subr.mxu0 0.0
        %579 = vmatpush1.msra.mxu0 0.0
        %580 = vmatprep.subr.mxu0 0.0
        %581 = vmatpush1.msra.mxu0 0.0
        %582 = vmatprep.subr.mxu0 0.0
        %583 = vmatpush1.msra.mxu0 0.0
        %584 = vmatprep.subr.mxu0 0.0
        %585 = vmatpush1.msra.mxu0 0.0
        %586 = vmatprep.subr.mxu0 0.0
        %587 = vmatpush1.msra.mxu0 0.0
        %588 = vmatprep.subr.mxu0 0.0
        %589 = vmatpush1.msra.mxu0 0.0
        %590 = vmatprep.subr.mxu0 0.0
        %591 = vmatpush1.msra.mxu0 0.0
        %592 = vmatprep.subr.mxu0 0.0
        %593 = vmatpush1.msra.mxu0 0.0
        %594 = vmatprep.subr.mxu0 0.0
        %595 = vmatpush1.msra.mxu0 0.0
        %596 = vmatprep.subr.mxu0 0.0
        %597 = vmatpush1.msra.mxu0 0.0
        %598 = vmatprep.subr.mxu0 0.0
        %599 = vmatpush1.msra.mxu0 0.0
        %600 = vmatprep.subr.mxu0 0.0
        %601 = vmatpush1.msra.mxu0 0.0
        %602 = vmatprep.subr.mxu0 0.0
        %603 = vmatpush1.msra.mxu0 0.0
        %604 = vmatprep.subr.mxu0 0.0
        %605 = vmatpush1.msra.mxu0 0.0
        %606 = vmatprep.subr.mxu0 0.0
        %607 = vmatpush1.msra.mxu0 0.0
        %608 = vmatprep.subr.mxu0 0.0
        %609 = vmatpush1.msra.mxu0 0.0
        %610 = vmatprep.subr.mxu0 0.0
        %611 = vmatpush1.msra.mxu0 0.0
        %612 = vmatprep.subr.mxu0 0.0
        %613 = vmatpush1.msra.mxu0 0.0
        %614 = vmatprep.subr.mxu0 0.0
        %615 = vmatpush1.msra.mxu0 0.0
        %616 = vmatprep.mubr.f32.mxu0 0.0
        %617 = vmatmul.mubr.f32.gmra.mrb[0].mxu0 %v546
        %v618 = vpop.f32.mrb[0].mxu0
        %v619 = vadd.f32 0.0, %v618
        %v620 = vpop.f32.mrb[0].mxu0
        %v621 = vadd.f32 0.0, %v620
        %622 = vdwg.mxu0
        %623 = vst [vmem:[%s203] sm:$0xff] %v619
        %624 = vst [vmem:[%s203 + $0x8] sm:$0xff] %v621
        %s625 = sand.u32 %s120, 1
        %s626 = scalar_lea.sflag [#allocation3], %s625
        %s627 = sand.u32 %s120, 1
        %s628 = smul.addr %s627, 16
        %s629 = scalar_lea.vmem [#allocation2], %s628
        // Predicated region
        $region37: #{tpu_custom_call.1} parent=35 // pred_check
          %p630 = pneg %p130
        $region38: #{tpu_custom_call.1} parent=35 // pred_check_branch
          %632 = sbr.rel (%p630) target = $region40
        $region39: #{tpu_custom_call.1} parent=35 // pred_region
          %s634 = ssub.s32 256, 256
          %635 = vsyncadd %s626, %s634
          %s636 = smul.addr %s18, 2
          %s637 = smul.addr %s636, 128
          %s638 = scalar_lea.hbm %s4, %s637
          %s640 = sshll.u32 %s629, 4
          %s641 = int_to_ptr.vmem [resolvable:$true] %s640
          %643 = dma.vmem_to_hbm [thread:$0]  %s641, 256, %s638, %s626
        $region40: #{tpu_custom_call.1} parent=35 // pred_fallthru
          _
      $region36: #{tpu_custom_call.1} parent=5 // pred_fallthru
        _
      %p644 = scmp.le.s32.totalorder 2, %s13
      // Predicated region
      $region41: #{tpu_custom_call.1} parent=5 // pred_check
        %p645 = pneg %p644
      $region42: #{tpu_custom_call.1} parent=5 // pred_check_branch
        %647 = sbr.rel (%p645) target = $region44
      $region43: #{tpu_custom_call.1} parent=5 // pred_region
        %s648 = ssub.s32 %s13, 2
        // Predicated region
        $region45: #{tpu_custom_call.1} parent=43 // pred_check
          %p649 = pneg %p136
        $region46: #{tpu_custom_call.1} parent=43 // pred_check_branch
          %651 = sbr.rel (%p649) target = $region48
        $region47: #{tpu_custom_call.1} parent=43 // pred_region
          %s652 = sand.u32 %s121, 1
          %s653 = scalar_lea.sflag [#allocation3], %s652
          %s654 = sand.u32 %s121, 1
          %s655 = smul.addr %s654, 16
          %s656 = scalar_lea.vmem [#allocation2], %s655
          %657 = dma.done %s653, 256
        $region48: #{tpu_custom_call.1} parent=43 // pred_fallthru
          _
      $region44: #{tpu_custom_call.1} parent=5 // pred_fallthru
        _
    $region6: #{tpu_custom_call.1} parent=1 // loop_footer
      %s17 = sadd.s32 1, %s13
    $region7: #{tpu_custom_call.1} parent=1 // loop_footer_branch
      %12 = sbr.rel target = $region3
    $region8: #{tpu_custom_call.1} parent=1 // loop_exit
      _
    %658 = vsyncpa [#allocation3], 1
    %s659 = scalar_lea.sflag [#allocation3], 1
    %660 = vsyncpa %s659, 1

</llo_original>
